<compile_context>
chip_gen: v7x
topology: tpu7x:2x2x1
jax: 0.10.0
libtpu: 0.0.40
codegen_flags: <defaults>
</compile_context>

<pallas_src>
import jax
import jax.numpy as jnp
from jax.experimental import pallas as pl
from jax.experimental.pallas import tpu as pltpu  # noqa: F401  (kept for TPU backend)

# --- fixed module hyper-parameters (from __init__, "不能修改") ---------------
EMB = 16             # embedding
ATTN = 32            # attn_exact
FAULT = 6            # fault_type
SEQ = 8              # synthetic encoder sequence length
D_IN = 256           # synthetic flattened input length (original uses size=1000)
N_BRANCH = 3
B_PAD = 8            # sublane-aligned padded batch per branch
OUT_PAD = 128        # lane-padded output width (real width is FAULT=6)


def _fused_kernel(x_ref, wenc_ref, benc_ref, wattn_ref, battn_ref,
                  wf_ref, bf_ref, expand_ref, gather_ref, out_ref):
    """Single-step kernel: all three branches in one invocation.

    x_ref      : (3*B_PAD, D_IN)   branch b occupies rows [b*8, (b+1)*8)
    wenc_ref   : (D_IN, EMB)       token-0 slice of the synthetic encoder weight
    benc_ref   : (1, EMB)
    wattn_ref  : (EMB, ATTN)       shared attention head
    battn_ref  : (1, ATTN)
    wf_ref     : (3, EMB, ATTN*FAULT)  per-branch fault-value heads
    bf_ref     : (3, 1, ATTN*FAULT)
    expand_ref : (ATTN, ATTN*FAULT)    expand[k, m] = (m // FAULT == k)
    gather_ref : (ATTN*FAULT, OUT_PAD) gather[m, j] = (m % FAULT == j), zero for j>=6
    out_ref    : (3*B_PAD, OUT_PAD)    only columns [:FAULT] are meaningful
    """
    x = x_ref[...]                                                   # (24, D_IN)

    # --- synthetic Encoder, token 0 only (weight pre-sliced at prepare time) --
    pooled = jnp.tanh(
        jnp.dot(x, wenc_ref[...], preferred_element_type=jnp.float32)
        + benc_ref[...])                                             # (24, EMB)

    w_attn = wattn_ref[...]
    b_attn = battn_ref[...]
    expand = expand_ref[...]                                         # (32, 192)
    gather = gather_ref[...]                                         # (192, 128)

    for b in range(N_BRANCH):                                        # unrolled
        p = pooled[b * B_PAD:(b + 1) * B_PAD, :]                     # (8, EMB) vreg-aligned

        # attention scores (lane-0 aligned, separate dot from the fv head)
        scores = jnp.dot(p, w_attn, preferred_element_type=jnp.float32) + b_attn
        scores = scores - jnp.max(scores, axis=1, keepdims=True)
        e = jnp.exp(scores)
        attn = e / jnp.sum(e, axis=1, keepdims=True)                 # exact softmax

        # fault values for this branch (flattened (ATTN, FAULT) -> ATTN*FAULT lanes)
        fv = (jnp.dot(p, wf_ref[b], preferred_element_type=jnp.float32)
              + bf_ref[b])                                           # (8, 192)

        # einsum('bk,bkj->bj') == ((attn @ expand) * fv) @ gather
        attn_exp = jnp.dot(attn, expand, preferred_element_type=jnp.float32)
        out_ref[b * B_PAD:(b + 1) * B_PAD, :] = jnp.dot(
            attn_exp * fv, gather, preferred_element_type=jnp.float32)


def _fused_forward(x_all, prep):
    return pl.pallas_call(
        _fused_kernel,
        out_shape=jax.ShapeDtypeStruct((N_BRANCH * B_PAD, OUT_PAD), jnp.float32),
    )(x_all, prep["w_enc0"], prep["b_enc0"], prep["w_attn"], prep["b_attn"],
      prep["w_f"], prep["b_f"], prep["expand"], prep["gather"])


def init_params(key):
    ks = jax.random.split(key, 10)
    sc = 0.05
    return {
        "w_enc": sc * jax.random.normal(ks[0], (D_IN, SEQ * EMB), jnp.float32),
        "b_enc": sc * jax.random.normal(ks[1], (1, SEQ * EMB), jnp.float32),
        "w_attn": sc * jax.random.normal(ks[2], (EMB, ATTN), jnp.float32),
        "b_attn": sc * jax.random.normal(ks[3], (1, ATTN), jnp.float32),
        "w_f1": sc * jax.random.normal(ks[4], (EMB, ATTN * FAULT), jnp.float32),
        "b_f1": sc * jax.random.normal(ks[5], (1, ATTN * FAULT), jnp.float32),
        "w_f2": sc * jax.random.normal(ks[6], (EMB, ATTN * FAULT), jnp.float32),
        "b_f2": sc * jax.random.normal(ks[7], (1, ATTN * FAULT), jnp.float32),
        "w_f3": sc * jax.random.normal(ks[8], (EMB, ATTN * FAULT), jnp.float32),
        "b_f3": sc * jax.random.normal(ks[9], (1, ATTN * FAULT), jnp.float32),
    }


def prepare_params(params):
    """One-time (param-load time) construction of all kernel operands."""
    # Token-0 slice of the synthetic encoder (only columns ever used downstream).
    w_enc0 = params["w_enc"][:, :EMB]                               # (D_IN, EMB)
    b_enc0 = params["b_enc"][:, :EMB]                               # (1, EMB)

    # Per-branch fault-value heads, stacked on a leading branch axis.
    w_f = jnp.stack([params["w_f1"], params["w_f2"], params["w_f3"]])   # (3, EMB, 192)
    b_f = jnp.stack([params["b_f1"], params["b_f2"], params["b_f3"]])   # (3, 1, 192)

    # expand[k, m] = 1 iff m // FAULT == k   (broadcast attn weight over fault cols)
    k = jnp.arange(ATTN)[:, None]
    m = jnp.arange(ATTN * FAULT)[None, :]
    expand = (m // FAULT == k).astype(jnp.float32)                  # (32, 192)

    # gather[m, j] = 1 iff m % FAULT == j, lane-padded to OUT_PAD columns.
    mm = jnp.arange(ATTN * FAULT)[:, None]
    jj = jnp.arange(OUT_PAD)[None, :]
    gather = (mm % FAULT == jj).astype(jnp.float32)                 # (192, 128)

    prep = {
        "w_enc0": w_enc0, "b_enc0": b_enc0,
        "w_attn": params["w_attn"], "b_attn": params["b_attn"],
        "w_f": w_f, "b_f": b_f,
        "expand": expand, "gather": gather,
    }
    return jax.tree_util.tree_map(jnp.asarray, prep)


def batch_process_pretrained_model1_forward(prep, x1, x2, x3):
    """Mirrors the PyTorch forward: returns (f1_out, f2_out, f3_out)."""
    xs = (x1, x2, x3)
    batches = [x.shape[0] for x in xs]
    if all(b == 0 for b in batches):
        return None, None, None

    # Pad each branch to a full 8-row sublane tile and stack along sublanes.
    blocks = []
    for x, b in zip(xs, batches):
        if b > 0:
            blocks.append(jnp.pad(x.astype(jnp.float32), ((0, B_PAD - b), (0, 0))))
        else:
            blocks.append(jnp.zeros((B_PAD, D_IN), jnp.float32))
    x_all = jnp.concatenate(blocks, axis=0)                          # (24, D_IN)

    out = _fused_forward(x_all, prep)                                # (24, 128)

    results = []
    for i, b in enumerate(batches):
        results.append(out[i * B_PAD:i * B_PAD + b, :FAULT] if b > 0 else None)
    return tuple(results)


def _reference_forward(params, x1, x2, x3):
    """Pure-JAX reference for correctness checking."""
    def run(x, w_f, b_f):
        if x.shape[0] == 0:
            return None
        seq = jnp.tanh(x @ params["w_enc"] + params["b_enc"]
                       ).reshape(x.shape[0], SEQ, EMB)
        out = seq[:, 0, :]
        attn = jax.nn.softmax(out @ params["w_attn"] + params["b_attn"], axis=1)
        fv = (out @ w_f + b_f).reshape(-1, ATTN, FAULT)
        return jnp.einsum("bk,bkj->bj", attn, fv)
    return (run(x1, params["w_f1"], params["b_f1"]),
            run(x2, params["w_f2"], params["b_f2"]),
            run(x3, params["w_f3"], params["b_f3"]))


if __name__ == "__main__":
    key = jax.random.PRNGKey(0)
    kp, k1, k2, k3 = jax.random.split(key, 4)
    params = init_params(kp)
    prep = prepare_params(params)          # one-time param-derived operand build
    jax.block_until_ready(prep)

    # small, deterministic example inputs (flattened "sampled" fault signals,
    # already scaled like `-10 * sampling(...)` in the original preprocessing)
    x1 = -10.0 * jax.random.uniform(k1, (4, D_IN), jnp.float32)
    x2 = -10.0 * jax.random.uniform(k2, (3, D_IN), jnp.float32)
    x3 = -10.0 * jax.random.uniform(k3, (2, D_IN), jnp.float32)

    f1, f2, f3 = batch_process_pretrained_model1_forward(prep, x1, x2, x3)
    jax.block_until_ready((f1, f2, f3))

    r1, r2, r3 = _reference_forward(params, x1, x2, x3)
    assert f1.shape == (4, FAULT) and f2.shape == (3, FAULT) and f3.shape == (2, FAULT)
    for got, ref in ((f1, r1), (f2, r2), (f3, r3)):
        assert jnp.allclose(got, ref, atol=1e-4, rtol=1e-4)

    print("KERNEL_OK")
</pallas_src>

<mosaic_0001>
module attributes {stable_mosaic.version = 11 : i64} {
  func.func @_fused_kernel(%arg0: memref<24x256xf32, #tpu.memory_space<vmem>>, %arg1: memref<256x16xf32, #tpu.memory_space<vmem>>, %arg2: memref<1x16xf32, #tpu.memory_space<vmem>>, %arg3: memref<16x32xf32, #tpu.memory_space<vmem>>, %arg4: memref<1x32xf32, #tpu.memory_space<vmem>>, %arg5: memref<3x16x192xf32, #tpu.memory_space<vmem>>, %arg6: memref<3x1x192xf32, #tpu.memory_space<vmem>>, %arg7: memref<32x192xf32, #tpu.memory_space<vmem>>, %arg8: memref<192x128xf32, #tpu.memory_space<vmem>>, %arg9: memref<24x128xf32, #tpu.memory_space<vmem>>) attributes {dimension_semantics = [], scalar_prefetch = 0 : i64, scratch_operands = 0 : i64, tpu.core_type = #tpu.core_type<tc>} {
    %c0 = arith.constant 0 : index
    %c0_0 = arith.constant 0 : index
    %0 = vector.load %arg0[%c0, %c0_0] : memref<24x256xf32, #tpu.memory_space<vmem>>, vector<24x256xf32>
    %c0_1 = arith.constant 0 : index
    %c0_2 = arith.constant 0 : index
    %1 = vector.load %arg1[%c0_1, %c0_2] : memref<256x16xf32, #tpu.memory_space<vmem>>, vector<256x16xf32>
    %cst = arith.constant dense<0.000000e+00> : vector<24x16xf32>
    %2 = tpu.matmul %0, %1, %cst {dimension_numbers = #tpu.dot_dimension_numbers<[1], [0], [0], [1], [0, 0, 1, 1], [], []>} : vector<24x256xf32>, vector<256x16xf32>, vector<24x16xf32> -> vector<24x16xf32>
    %c0_3 = arith.constant 0 : index
    %c0_4 = arith.constant 0 : index
    %3 = vector.load %arg2[%c0_3, %c0_4] : memref<1x16xf32, #tpu.memory_space<vmem>>, vector<1x16xf32>
    %4 = vector.broadcast %3 : vector<1x16xf32> to vector<24x16xf32>
    %5 = arith.addf %2, %4 : vector<24x16xf32>
    %6 = math.tanh %5 : vector<24x16xf32>
    %c0_5 = arith.constant 0 : index
    %c0_6 = arith.constant 0 : index
    %7 = vector.load %arg3[%c0_5, %c0_6] : memref<16x32xf32, #tpu.memory_space<vmem>>, vector<16x32xf32>
    %c0_7 = arith.constant 0 : index
    %c0_8 = arith.constant 0 : index
    %8 = vector.load %arg4[%c0_7, %c0_8] : memref<1x32xf32, #tpu.memory_space<vmem>>, vector<1x32xf32>
    %c0_9 = arith.constant 0 : index
    %c0_10 = arith.constant 0 : index
    %9 = vector.load %arg7[%c0_9, %c0_10] : memref<32x192xf32, #tpu.memory_space<vmem>>, vector<32x192xf32>
    %c0_11 = arith.constant 0 : index
    %c0_12 = arith.constant 0 : index
    %10 = vector.load %arg8[%c0_11, %c0_12] : memref<192x128xf32, #tpu.memory_space<vmem>>, vector<192x128xf32>
    %11 = vector.extract_strided_slice %6 {offsets = [0, 0], sizes = [8, 16], strides = [1, 1]} : vector<24x16xf32> to vector<8x16xf32>
    %cst_13 = arith.constant dense<0.000000e+00> : vector<8x32xf32>
    %12 = tpu.matmul %11, %7, %cst_13 {dimension_numbers = #tpu.dot_dimension_numbers<[1], [0], [0], [1], [0, 0, 1, 1], [], []>} : vector<8x16xf32>, vector<16x32xf32>, vector<8x32xf32> -> vector<8x32xf32>
    %13 = vector.broadcast %8 : vector<1x32xf32> to vector<8x32xf32>
    %14 = arith.addf %12, %13 : vector<8x32xf32>
    %cst_14 = arith.constant dense<0xFF800000> : vector<8xf32>
    %15 = vector.multi_reduction <maximumf>, %14, %cst_14 [1] : vector<8x32xf32> to vector<8xf32>
    %16 = vector.shape_cast %15 : vector<8xf32> to vector<8x1xf32>
    %17 = vector.broadcast %16 : vector<8x1xf32> to vector<8x32xf32>
    %18 = arith.subf %14, %17 : vector<8x32xf32>
    %19 = math.exp %18 : vector<8x32xf32>
    %cst_15 = arith.constant dense<0.000000e+00> : vector<8xf32>
    %20 = vector.multi_reduction <add>, %19, %cst_15 [1] : vector<8x32xf32> to vector<8xf32>
    %21 = vector.shape_cast %20 : vector<8xf32> to vector<8x1xf32>
    %22 = vector.broadcast %21 : vector<8x1xf32> to vector<8x32xf32>
    %23 = arith.divf %19, %22 : vector<8x32xf32>
    %c0_16 = arith.constant 0 : index
    %c0_17 = arith.constant 0 : index
    %c0_18 = arith.constant 0 : index
    %24 = vector.load %arg5[%c0_16, %c0_17, %c0_18] : memref<3x16x192xf32, #tpu.memory_space<vmem>>, vector<1x16x192xf32>
    %25 = vector.shape_cast %24 : vector<1x16x192xf32> to vector<16x192xf32>
    %cst_19 = arith.constant dense<0.000000e+00> : vector<8x192xf32>
    %26 = tpu.matmul %11, %25, %cst_19 {dimension_numbers = #tpu.dot_dimension_numbers<[1], [0], [0], [1], [0, 0, 1, 1], [], []>} : vector<8x16xf32>, vector<16x192xf32>, vector<8x192xf32> -> vector<8x192xf32>
    %c0_20 = arith.constant 0 : index
    %c0_21 = arith.constant 0 : index
    %c0_22 = arith.constant 0 : index
    %27 = vector.load %arg6[%c0_20, %c0_21, %c0_22] : memref<3x1x192xf32, #tpu.memory_space<vmem>>, vector<1x1x192xf32>
    %28 = vector.shape_cast %27 : vector<1x1x192xf32> to vector<1x192xf32>
    %29 = vector.broadcast %28 : vector<1x192xf32> to vector<8x192xf32>
    %30 = arith.addf %26, %29 : vector<8x192xf32>
    %cst_23 = arith.constant dense<0.000000e+00> : vector<8x192xf32>
    %31 = tpu.matmul %23, %9, %cst_23 {dimension_numbers = #tpu.dot_dimension_numbers<[1], [0], [0], [1], [0, 0, 1, 1], [], []>} : vector<8x32xf32>, vector<32x192xf32>, vector<8x192xf32> -> vector<8x192xf32>
    %32 = arith.mulf %31, %30 : vector<8x192xf32>
    %cst_24 = arith.constant dense<0.000000e+00> : vector<8x128xf32>
    %33 = tpu.matmul %32, %10, %cst_24 {dimension_numbers = #tpu.dot_dimension_numbers<[1], [0], [0], [1], [0, 0, 1, 1], [], []>} : vector<8x192xf32>, vector<192x128xf32>, vector<8x128xf32> -> vector<8x128xf32>
    %c0_25 = arith.constant 0 : index
    %c0_26 = arith.constant 0 : index
    %34 = vector.load %arg9[%c0_25, %c0_26] : memref<24x128xf32, #tpu.memory_space<vmem>>, vector<8x128xf32>
    tpu.vector_store %arg9[%c0_25, %c0_26], %33 {strides = array<i32>} : memref<24x128xf32, #tpu.memory_space<vmem>>, vector<8x128xf32>,
    %35 = vector.extract_strided_slice %6 {offsets = [8, 0], sizes = [8, 16], strides = [1, 1]} : vector<24x16xf32> to vector<8x16xf32>
    %cst_27 = arith.constant dense<0.000000e+00> : vector<8x32xf32>
    %36 = tpu.matmul %35, %7, %cst_27 {dimension_numbers = #tpu.dot_dimension_numbers<[1], [0], [0], [1], [0, 0, 1, 1], [], []>} : vector<8x16xf32>, vector<16x32xf32>, vector<8x32xf32> -> vector<8x32xf32>
    %37 = vector.broadcast %8 : vector<1x32xf32> to vector<8x32xf32>
    %38 = arith.addf %36, %37 : vector<8x32xf32>
    %cst_28 = arith.constant dense<0xFF800000> : vector<8xf32>
    %39 = vector.multi_reduction <maximumf>, %38, %cst_28 [1] : vector<8x32xf32> to vector<8xf32>
    %40 = vector.shape_cast %39 : vector<8xf32> to vector<8x1xf32>
    %41 = vector.broadcast %40 : vector<8x1xf32> to vector<8x32xf32>
    %42 = arith.subf %38, %41 : vector<8x32xf32>
    %43 = math.exp %42 : vector<8x32xf32>
    %cst_29 = arith.constant dense<0.000000e+00> : vector<8xf32>
    %44 = vector.multi_reduction <add>, %43, %cst_29 [1] : vector<8x32xf32> to vector<8xf32>
    %45 = vector.shape_cast %44 : vector<8xf32> to vector<8x1xf32>
    %46 = vector.broadcast %45 : vector<8x1xf32> to vector<8x32xf32>
    %47 = arith.divf %43, %46 : vector<8x32xf32>
    %c1 = arith.constant 1 : index
    %c0_30 = arith.constant 0 : index
    %c0_31 = arith.constant 0 : index
    %48 = vector.load %arg5[%c1, %c0_30, %c0_31] : memref<3x16x192xf32, #tpu.memory_space<vmem>>, vector<1x16x192xf32>
    %49 = vector.shape_cast %48 : vector<1x16x192xf32> to vector<16x192xf32>
    %cst_32 = arith.constant dense<0.000000e+00> : vector<8x192xf32>
    %50 = tpu.matmul %35, %49, %cst_32 {dimension_numbers = #tpu.dot_dimension_numbers<[1], [0], [0], [1], [0, 0, 1, 1], [], []>} : vector<8x16xf32>, vector<16x192xf32>, vector<8x192xf32> -> vector<8x192xf32>
    %c1_33 = arith.constant 1 : index
    %c0_34 = arith.constant 0 : index
    %c0_35 = arith.constant 0 : index
    %51 = vector.load %arg6[%c1_33, %c0_34, %c0_35] : memref<3x1x192xf32, #tpu.memory_space<vmem>>, vector<1x1x192xf32>
    %52 = vector.shape_cast %51 : vector<1x1x192xf32> to vector<1x192xf32>
    %53 = vector.broadcast %52 : vector<1x192xf32> to vector<8x192xf32>
    %54 = arith.addf %50, %53 : vector<8x192xf32>
    %cst_36 = arith.constant dense<0.000000e+00> : vector<8x192xf32>
    %55 = tpu.matmul %47, %9, %cst_36 {dimension_numbers = #tpu.dot_dimension_numbers<[1], [0], [0], [1], [0, 0, 1, 1], [], []>} : vector<8x32xf32>, vector<32x192xf32>, vector<8x192xf32> -> vector<8x192xf32>
    %56 = arith.mulf %55, %54 : vector<8x192xf32>
    %cst_37 = arith.constant dense<0.000000e+00> : vector<8x128xf32>
    %57 = tpu.matmul %56, %10, %cst_37 {dimension_numbers = #tpu.dot_dimension_numbers<[1], [0], [0], [1], [0, 0, 1, 1], [], []>} : vector<8x192xf32>, vector<192x128xf32>, vector<8x128xf32> -> vector<8x128xf32>
    %c8 = arith.constant 8 : index
    %c0_38 = arith.constant 0 : index
    %58 = vector.load %arg9[%c8, %c0_38] : memref<24x128xf32, #tpu.memory_space<vmem>>, vector<8x128xf32>
    tpu.vector_store %arg9[%c8, %c0_38], %57 {strides = array<i32>} : memref<24x128xf32, #tpu.memory_space<vmem>>, vector<8x128xf32>,
    %59 = vector.extract_strided_slice %6 {offsets = [16, 0], sizes = [8, 16], strides = [1, 1]} : vector<24x16xf32> to vector<8x16xf32>
    %cst_39 = arith.constant dense<0.000000e+00> : vector<8x32xf32>
    %60 = tpu.matmul %59, %7, %cst_39 {dimension_numbers = #tpu.dot_dimension_numbers<[1], [0], [0], [1], [0, 0, 1, 1], [], []>} : vector<8x16xf32>, vector<16x32xf32>, vector<8x32xf32> -> vector<8x32xf32>
    %61 = vector.broadcast %8 : vector<1x32xf32> to vector<8x32xf32>
    %62 = arith.addf %60, %61 : vector<8x32xf32>
    %cst_40 = arith.constant dense<0xFF800000> : vector<8xf32>
    %63 = vector.multi_reduction <maximumf>, %62, %cst_40 [1] : vector<8x32xf32> to vector<8xf32>
    %64 = vector.shape_cast %63 : vector<8xf32> to vector<8x1xf32>
    %65 = vector.broadcast %64 : vector<8x1xf32> to vector<8x32xf32>
    %66 = arith.subf %62, %65 : vector<8x32xf32>
    %67 = math.exp %66 : vector<8x32xf32>
    %cst_41 = arith.constant dense<0.000000e+00> : vector<8xf32>
    %68 = vector.multi_reduction <add>, %67, %cst_41 [1] : vector<8x32xf32> to vector<8xf32>
    %69 = vector.shape_cast %68 : vector<8xf32> to vector<8x1xf32>
    %70 = vector.broadcast %69 : vector<8x1xf32> to vector<8x32xf32>
    %71 = arith.divf %67, %70 : vector<8x32xf32>
    %c2 = arith.constant 2 : index
    %c0_42 = arith.constant 0 : index
    %c0_43 = arith.constant 0 : index
    %72 = vector.load %arg5[%c2, %c0_42, %c0_43] : memref<3x16x192xf32, #tpu.memory_space<vmem>>, vector<1x16x192xf32>
    %73 = vector.shape_cast %72 : vector<1x16x192xf32> to vector<16x192xf32>
    %cst_44 = arith.constant dense<0.000000e+00> : vector<8x192xf32>
    %74 = tpu.matmul %59, %73, %cst_44 {dimension_numbers = #tpu.dot_dimension_numbers<[1], [0], [0], [1], [0, 0, 1, 1], [], []>} : vector<8x16xf32>, vector<16x192xf32>, vector<8x192xf32> -> vector<8x192xf32>
    %c2_45 = arith.constant 2 : index
    %c0_46 = arith.constant 0 : index
    %c0_47 = arith.constant 0 : index
    %75 = vector.load %arg6[%c2_45, %c0_46, %c0_47] : memref<3x1x192xf32, #tpu.memory_space<vmem>>, vector<1x1x192xf32>
    %76 = vector.shape_cast %75 : vector<1x1x192xf32> to vector<1x192xf32>
    %77 = vector.broadcast %76 : vector<1x192xf32> to vector<8x192xf32>
    %78 = arith.addf %74, %77 : vector<8x192xf32>
    %cst_48 = arith.constant dense<0.000000e+00> : vector<8x192xf32>
    %79 = tpu.matmul %71, %9, %cst_48 {dimension_numbers = #tpu.dot_dimension_numbers<[1], [0], [0], [1], [0, 0, 1, 1], [], []>} : vector<8x32xf32>, vector<32x192xf32>, vector<8x192xf32> -> vector<8x192xf32>
    %80 = arith.mulf %79, %78 : vector<8x192xf32>
    %cst_49 = arith.constant dense<0.000000e+00> : vector<8x128xf32>
    %81 = tpu.matmul %80, %10, %cst_49 {dimension_numbers = #tpu.dot_dimension_numbers<[1], [0], [0], [1], [0, 0, 1, 1], [], []>} : vector<8x192xf32>, vector<192x128xf32>, vector<8x128xf32> -> vector<8x128xf32>
    %c16 = arith.constant 16 : index
    %c0_50 = arith.constant 0 : index
    %82 = vector.load %arg9[%c16, %c0_50] : memref<24x128xf32, #tpu.memory_space<vmem>>, vector<8x128xf32>
    tpu.vector_store %arg9[%c16, %c0_50], %81 {strides = array<i32>} : memref<24x128xf32, #tpu.memory_space<vmem>>, vector<8x128xf32>,
    return
  }
}

</mosaic_0001>

<llo_original>
// kernel: tpu_custom_call.1
$region0: #{tpu_custom_call.1}
  #allocation0 [shape = 'u32[]', space=smem, size = 0x4, offset = 0x4, fixed_abs, tag = 'smem constant byte address 0x4 - core index']
  #allocation1 [shape = 'u32[144,128]{1,0:T(1,128)}', space=vmem, size = 0x12000, scoped, tag = 'internal scratch']
  %s0 = inlined_call_operand.hbm [shape: f32[24,256], index: 0, kind: input, shape index: {}]
  %s1 = inlined_call_operand.vmem [shape: f32[256,16], index: 1, kind: input, shape index: {}]
  %s2 = inlined_call_operand.vmem [shape: f32[1,16], index: 2, kind: input, shape index: {}]
  %s3 = inlined_call_operand.vmem [shape: f32[16,32], index: 3, kind: input, shape index: {}]
  %s4 = inlined_call_operand.vmem [shape: f32[1,32], index: 4, kind: input, shape index: {}]
  %s5 = inlined_call_operand.vmem [shape: f32[3,16,192], index: 5, kind: input, shape index: {}]
  %s6 = inlined_call_operand.vmem [shape: f32[3,1,192], index: 6, kind: input, shape index: {}]
  %s7 = inlined_call_operand.hbm [shape: f32[32,192], index: 7, kind: input, shape index: {}]
  %s8 = inlined_call_operand.vmem [shape: f32[192,128], index: 8, kind: input, shape index: {}]
  %s9 = inlined_call_operand.hbm [shape: f32[24,128], index: 9, kind: output, shape index: {}]
  %s10 = sld [smem:[#allocation0]]
  $region54: #{tpu_custom_call.1} parent=0
    _
  %s12 = ssub.s32 1, %s10
  %s13 = scalar_select 0, %s12, %s10
  $region1: #{tpu_custom_call.1} parent=0
    #allocation2 [shape = 'u8[24576]{0}', space=vmem, size = 0x6000, scoped, tag = 'input window, operand 0, single buffered']
    #allocation3 [shape = 's32[1]{0}', space=sflag, size = 0x4, scoped, tag = 'scoped memory for tpu_custom_call.1']
    #allocation4 [shape = 's32[1]{0}', space=sflag, size = 0x4, scoped, tag = 'scoped memory for tpu_custom_call.1']
    #allocation5 [shape = 'u8[32768]{0}', space=vmem, size = 0x8000, scoped, tag = 'input window, operand 7, single buffered']
    #allocation6 [shape = 's32[1]{0}', space=sflag, size = 0x4, scoped, tag = 'scoped memory for tpu_custom_call.1']
    #allocation7 [shape = 'u8[12288]{0}', space=vmem, size = 0x3000, scoped, tag = 'output window, operand 0, single buffered']
    %14 = vsyncpa [#allocation3], 0
    %15 = vsyncpa [#allocation6], 0
    %16 = vsyncpa [#allocation4], 0
    // Predicated region
    $region2: #{tpu_custom_call.1} parent=1 // pred_check
      _
    $region3: #{tpu_custom_call.1} parent=1 // pred_check_branch
      %18 = sbr.rel (0) target = $region5
    $region4: #{tpu_custom_call.1} parent=1 // pred_region
      %s20 = ssub.s32 768, 768
      %21 = vsyncadd [#allocation3], %s20
      %s22 = sshll.u32 [#allocation2], 4
      %s23 = int_to_ptr.vmem [resolvable:$true] %s22
      %28 = dma.hbm_to_vmem [thread:$0]  %s0, 768, %s23, [#allocation3], 256, 256, 16
    $region5: #{tpu_custom_call.1} parent=1 // pred_fallthru
      _
    // Predicated region
    $region6: #{tpu_custom_call.1} parent=1 // pred_check
      _
    $region7: #{tpu_custom_call.1} parent=1 // pred_check_branch
      %30 = sbr.rel (0) target = $region9
    $region8: #{tpu_custom_call.1} parent=1 // pred_region
      _
    $region9: #{tpu_custom_call.1} parent=1 // pred_fallthru
      _
    // Predicated region
    $region10: #{tpu_custom_call.1} parent=1 // pred_check
      _
    $region11: #{tpu_custom_call.1} parent=1 // pred_check_branch
      %32 = sbr.rel (0) target = $region13
    $region12: #{tpu_custom_call.1} parent=1 // pred_region
      _
    $region13: #{tpu_custom_call.1} parent=1 // pred_fallthru
      _
    // Predicated region
    $region14: #{tpu_custom_call.1} parent=1 // pred_check
      _
    $region15: #{tpu_custom_call.1} parent=1 // pred_check_branch
      %34 = sbr.rel (0) target = $region17
    $region16: #{tpu_custom_call.1} parent=1 // pred_region
      _
    $region17: #{tpu_custom_call.1} parent=1 // pred_fallthru
      _
    // Predicated region
    $region18: #{tpu_custom_call.1} parent=1 // pred_check
      _
    $region19: #{tpu_custom_call.1} parent=1 // pred_check_branch
      %36 = sbr.rel (0) target = $region21
    $region20: #{tpu_custom_call.1} parent=1 // pred_region
      _
    $region21: #{tpu_custom_call.1} parent=1 // pred_fallthru
      _
    // Predicated region
    $region22: #{tpu_custom_call.1} parent=1 // pred_check
      _
    $region23: #{tpu_custom_call.1} parent=1 // pred_check_branch
      %38 = sbr.rel (0) target = $region25
    $region24: #{tpu_custom_call.1} parent=1 // pred_region
      _
    $region25: #{tpu_custom_call.1} parent=1 // pred_fallthru
      _
    // Predicated region
    $region26: #{tpu_custom_call.1} parent=1 // pred_check
      _
    $region27: #{tpu_custom_call.1} parent=1 // pred_check_branch
      %40 = sbr.rel (0) target = $region29
    $region28: #{tpu_custom_call.1} parent=1 // pred_region
      _
    $region29: #{tpu_custom_call.1} parent=1 // pred_fallthru
      _
    // Predicated region
    $region30: #{tpu_custom_call.1} parent=1 // pred_check
      _
    $region31: #{tpu_custom_call.1} parent=1 // pred_check_branch
      %42 = sbr.rel (0) target = $region33
    $region32: #{tpu_custom_call.1} parent=1 // pred_region
      %s44 = ssub.s32 1024, 1024
      %45 = vsyncadd [#allocation6], %s44
      %s46 = sshll.u32 [#allocation5], 4
      %s47 = int_to_ptr.vmem [resolvable:$true] %s46
      %52 = dma.hbm_to_vmem [thread:$0]  %s7, 1024, %s47, [#allocation6], 256, 256, 16
    $region33: #{tpu_custom_call.1} parent=1 // pred_fallthru
      _
    // Predicated region
    $region34: #{tpu_custom_call.1} parent=1 // pred_check
      _
    $region35: #{tpu_custom_call.1} parent=1 // pred_check_branch
      %54 = sbr.rel (0) target = $region37
    $region36: #{tpu_custom_call.1} parent=1 // pred_region
      _
    $region37: #{tpu_custom_call.1} parent=1 // pred_fallthru
      _
    // Predicated region
    $region38: #{tpu_custom_call.1} parent=1 // pred_check
      _
    $region39: #{tpu_custom_call.1} parent=1 // pred_check_branch
      %56 = sbr.rel (0) target = $region41
    $region40: #{tpu_custom_call.1} parent=1 // pred_region
      %57 = dma.done [#allocation3], 768
    $region41: #{tpu_custom_call.1} parent=1 // pred_fallthru
      _
    // Predicated region
    $region42: #{tpu_custom_call.1} parent=1 // pred_check
      _
    $region43: #{tpu_custom_call.1} parent=1 // pred_check_branch
      %59 = sbr.rel (0) target = $region45
    $region44: #{tpu_custom_call.1} parent=1 // pred_region
      %60 = dma.done [#allocation6], 1024
    $region45: #{tpu_custom_call.1} parent=1 // pred_fallthru
      _
    %v61 = vld [vmem:[#allocation2] sm:$0xff]
    %v62 = vld [vmem:[#allocation2 + $0x8] sm:$0xff]
    %v63 = vld [vmem:[#allocation2 + $0x10] sm:$0xff]
    %v64 = vld [vmem:[#allocation2 + $0x18] sm:$0xff]
    %v65 = vld [vmem:[#allocation2 + $0x20] sm:$0xff]
    %v66 = vld [vmem:[#allocation2 + $0x28] sm:$0xff]
    %v67 = vld [vmem:[%s1] sm:$0xff]
    %v68 = vld [vmem:[%s1 + $0x8] sm:$0xff]
    %v69 = vld [vmem:[%s1 + $0x10] sm:$0xff]
    %v70 = vld [vmem:[%s1 + $0x18] sm:$0xff]
    %v71 = vld [vmem:[%s1 + $0x20] sm:$0xff]
    %v72 = vld [vmem:[%s1 + $0x28] sm:$0xff]
    %v73 = vld [vmem:[%s1 + $0x30] sm:$0xff]
    %v74 = vld [vmem:[%s1 + $0x38] sm:$0xff]
    %v75 = vld [vmem:[%s1 + $0x40] sm:$0xff]
    %v76 = vld [vmem:[%s1 + $0x48] sm:$0xff]
    %v77 = vld [vmem:[%s1 + $0x50] sm:$0xff]
    %v78 = vld [vmem:[%s1 + $0x58] sm:$0xff]
    %v79 = vld [vmem:[%s1 + $0x60] sm:$0xff]
    %v80 = vld [vmem:[%s1 + $0x68] sm:$0xff]
    %v81 = vld [vmem:[%s1 + $0x70] sm:$0xff]
    %v82 = vld [vmem:[%s1 + $0x78] sm:$0xff]
    %v83 = vld [vmem:[%s1 + $0x80] sm:$0xff]
    %v84 = vld [vmem:[%s1 + $0x88] sm:$0xff]
    %v85 = vld [vmem:[%s1 + $0x90] sm:$0xff]
    %v86 = vld [vmem:[%s1 + $0x98] sm:$0xff]
    %v87 = vld [vmem:[%s1 + $0xa0] sm:$0xff]
    %v88 = vld [vmem:[%s1 + $0xa8] sm:$0xff]
    %v89 = vld [vmem:[%s1 + $0xb0] sm:$0xff]
    %v90 = vld [vmem:[%s1 + $0xb8] sm:$0xff]
    %v91 = vld [vmem:[%s1 + $0xc0] sm:$0xff]
    %v92 = vld [vmem:[%s1 + $0xc8] sm:$0xff]
    %v93 = vld [vmem:[%s1 + $0xd0] sm:$0xff]
    %v94 = vld [vmem:[%s1 + $0xd8] sm:$0xff]
    %v95 = vld [vmem:[%s1 + $0xe0] sm:$0xff]
    %v96 = vld [vmem:[%s1 + $0xe8] sm:$0xff]
    %v97 = vld [vmem:[%s1 + $0xf0] sm:$0xff]
    %v98 = vld [vmem:[%s1 + $0xf8] sm:$0xff]
    %v99 = vld [vmem:[%s2] sm:$0x1]
    %v101 = vlaneseq
    %v102 = vshrl.u32 %v101, 7
    %v103 = vsub.s32 0, %v102
    %v104 = vrot.slane %v99, %v103
    %106 = vmatprep.subr.mxu0 0.0
    %107 = vmatpush1.msra.mxu0 %v67
    %108 = vmatprep.subr.mxu0 0.0
    %109 = vmatpush1.msra.mxu0 %v68
    %110 = vmatprep.subr.mxu0 0.0
    %111 = vmatpush1.msra.mxu0 %v69
    %112 = vmatprep.subr.mxu0 0.0
    %113 = vmatpush1.msra.mxu0 %v70
    %114 = vmatprep.subr.mxu0 0.0
    %115 = vmatpush1.msra.mxu0 %v71
    %116 = vmatprep.subr.mxu0 0.0
    %117 = vmatpush1.msra.mxu0 %v72
    %118 = vmatprep.subr.mxu0 0.0
    %119 = vmatpush1.msra.mxu0 %v73
    %120 = vmatprep.subr.mxu0 0.0
    %121 = vmatpush1.msra.mxu0 %v74
    %122 = vmatprep.subr.mxu0 0.0
    %123 = vmatpush1.msra.mxu0 %v75
    %124 = vmatprep.subr.mxu0 0.0
    %125 = vmatpush1.msra.mxu0 %v76
    %126 = vmatprep.subr.mxu0 0.0
    %127 = vmatpush1.msra.mxu0 %v77
    %128 = vmatprep.subr.mxu0 0.0
    %129 = vmatpush1.msra.mxu0 %v78
    %130 = vmatprep.subr.mxu0 0.0
    %131 = vmatpush1.msra.mxu0 %v79
    %132 = vmatprep.subr.mxu0 0.0
    %133 = vmatpush1.msra.mxu0 %v80
    %134 = vmatprep.subr.mxu0 0.0
    %135 = vmatpush1.msra.mxu0 %v81
    %136 = vmatprep.subr.mxu0 0.0
    %137 = vmatpush1.msra.mxu0 %v82
    %138 = vmatprep.subr.mxu0 0.0
    %139 = vmatpush1.msra.mxu0 %v83
    %140 = vmatprep.subr.mxu0 0.0
    %141 = vmatpush1.msra.mxu0 %v84
    %142 = vmatprep.subr.mxu0 0.0
    %143 = vmatpush1.msra.mxu0 %v85
    %144 = vmatprep.subr.mxu0 0.0
    %145 = vmatpush1.msra.mxu0 %v86
    %146 = vmatprep.subr.mxu0 0.0
    %147 = vmatpush1.msra.mxu0 %v87
    %148 = vmatprep.subr.mxu0 0.0
    %149 = vmatpush1.msra.mxu0 %v88
    %150 = vmatprep.subr.mxu0 0.0
    %151 = vmatpush1.msra.mxu0 %v89
    %152 = vmatprep.subr.mxu0 0.0
    %153 = vmatpush1.msra.mxu0 %v90
    %154 = vmatprep.subr.mxu0 0.0
    %155 = vmatpush1.msra.mxu0 %v91
    %156 = vmatprep.subr.mxu0 0.0
    %157 = vmatpush1.msra.mxu0 %v92
    %158 = vmatprep.subr.mxu0 0.0
    %159 = vmatpush1.msra.mxu0 %v93
    %160 = vmatprep.subr.mxu0 0.0
    %161 = vmatpush1.msra.mxu0 %v94
    %162 = vmatprep.subr.mxu0 0.0
    %163 = vmatpush1.msra.mxu0 %v95
    %164 = vmatprep.subr.mxu0 0.0
    %165 = vmatpush1.msra.mxu0 %v96
    %166 = vmatprep.subr.mxu0 0.0
    %167 = vmatpush1.msra.mxu0 %v97
    %168 = vmatprep.subr.mxu0 0.0
    %169 = vmatpush1.msra.mxu0 %v98
    %170 = vmatprep.mubr.f32.mxu0 %v62
    %171 = vmatmul.mubr.f32.gmra.mrb[0].mxu0 %v61
    %v172 = vpop.f32.mrb[0].mxu0
    %v173 = vadd.f32 %v104, %v172
    %v174 = vpop.f32.mrb[0].mxu0
    %175 = vmatprep.mubr.f32.mxu0 %v64
    %176 = vmatmul.mubr.f32.gmra.mrb[0].mxu0 %v63
    %v177 = vpop.f32.mrb[0].mxu0
    %v178 = vadd.f32 %v104, %v177
    %v179 = vpop.f32.mrb[0].mxu0
    %180 = vmatprep.mubr.f32.mxu0 %v66
    %181 = vmatmul.mubr.f32.gmra.mrb[0].mxu0 %v65
    %v182 = vpop.f32.mrb[0].mxu0
    %v183 = vadd.f32 %v104, %v182
    %v184 = vpop.f32.mrb[0].mxu0
    %185 = vdwg.mxu0
    %v186 = vtanh.pop %v173
    %v187 = vtanh.pop %v178
    %v188 = vtanh.pop %v183
    %v189 = vld [vmem:[%s3] sm:$0xff]
    %v190 = vld [vmem:[%s3 + $0x8] sm:$0xff]
    %v191 = vld [vmem:[%s4] sm:$0x1]
    %v192 = vld [vmem:[#allocation5] sm:$0xff]
    %v193 = vld [vmem:[#allocation5 + $0x8] sm:$0xff]
    %v194 = vld [vmem:[#allocation5 + $0x10] sm:$0xff]
    %v195 = vld [vmem:[#allocation5 + $0x18] sm:$0xff]
    %v196 = vld [vmem:[#allocation5 + $0x20] sm:$0xff]
    %v197 = vld [vmem:[#allocation5 + $0x28] sm:$0xff]
    %v198 = vld [vmem:[#allocation5 + $0x30] sm:$0xff]
    %v199 = vld [vmem:[#allocation5 + $0x38] sm:$0xff]
    %v200 = vld [vmem:[%s8] sm:$0xff]
    %v201 = vld [vmem:[%s8 + $0x8] sm:$0xff]
    %v202 = vld [vmem:[%s8 + $0x10] sm:$0xff]
    %v203 = vld [vmem:[%s8 + $0x18] sm:$0xff]
    %v204 = vld [vmem:[%s8 + $0x20] sm:$0xff]
    %v205 = vld [vmem:[%s8 + $0x28] sm:$0xff]
    %v206 = vld [vmem:[%s8 + $0x30] sm:$0xff]
    %v207 = vld [vmem:[%s8 + $0x38] sm:$0xff]
    %v208 = vld [vmem:[%s8 + $0x40] sm:$0xff]
    %v209 = vld [vmem:[%s8 + $0x48] sm:$0xff]
    %v210 = vld [vmem:[%s8 + $0x50] sm:$0xff]
    %v211 = vld [vmem:[%s8 + $0x58] sm:$0xff]
    %v212 = vld [vmem:[%s8 + $0x60] sm:$0xff]
    %v213 = vld [vmem:[%s8 + $0x68] sm:$0xff]
    %v214 = vld [vmem:[%s8 + $0x70] sm:$0xff]
    %v215 = vld [vmem:[%s8 + $0x78] sm:$0xff]
    %v216 = vld [vmem:[%s8 + $0x80] sm:$0xff]
    %v217 = vld [vmem:[%s8 + $0x88] sm:$0xff]
    %v218 = vld [vmem:[%s8 + $0x90] sm:$0xff]
    %v219 = vld [vmem:[%s8 + $0x98] sm:$0xff]
    %v220 = vld [vmem:[%s8 + $0xa0] sm:$0xff]
    %v221 = vld [vmem:[%s8 + $0xa8] sm:$0xff]
    %v222 = vld [vmem:[%s8 + $0xb0] sm:$0xff]
    %v223 = vld [vmem:[%s8 + $0xb8] sm:$0xff]
    %v225 = vlaneseq
    %v226 = vshrl.u32 %v225, 7
    %v227 = vsub.s32 0, %v226
    %v228 = vrot.slane %v191, %v227
    %vm230 = vcmask 130048
    %v232 = vsel %vm230, %v186, 0
    %234 = vmatprep.subr.mxu0 0.0
    %235 = vmatpush1.msra.mxu0 %v189
    %236 = vmatprep.subr.mxu0 0.0
    %237 = vmatpush1.msra.mxu0 %v190
    %238 = vmatprep.subr.mxu0 0.0
    %239 = vmatpush1.msra.mxu0 0.0
    %240 = vmatprep.subr.mxu0 0.0
    %241 = vmatpush1.msra.mxu0 0.0
    %242 = vmatprep.subr.mxu0 0.0
    %243 = vmatpush1.msra.mxu0 0.0
    %244 = vmatprep.subr.mxu0 0.0
    %245 = vmatpush1.msra.mxu0 0.0
    %246 = vmatprep.subr.mxu0 0.0
    %247 = vmatpush1.msra.mxu0 0.0
    %248 = vmatprep.subr.mxu0 0.0
    %249 = vmatpush1.msra.mxu0 0.0
    %250 = vmatprep.subr.mxu0 0.0
    %251 = vmatpush1.msra.mxu0 0.0
    %252 = vmatprep.subr.mxu0 0.0
    %253 = vmatpush1.msra.mxu0 0.0
    %254 = vmatprep.subr.mxu0 0.0
    %255 = vmatpush1.msra.mxu0 0.0
    %256 = vmatprep.subr.mxu0 0.0
    %257 = vmatpush1.msra.mxu0 0.0
    %258 = vmatprep.subr.mxu0 0.0
    %259 = vmatpush1.msra.mxu0 0.0
    %260 = vmatprep.subr.mxu0 0.0
    %261 = vmatpush1.msra.mxu0 0.0
    %262 = vmatprep.subr.mxu0 0.0
    %263 = vmatpush1.msra.mxu0 0.0
    %264 = vmatprep.subr.mxu0 0.0
    %265 = vmatpush1.msra.mxu0 0.0
    %266 = vmatprep.subr.mxu0 0.0
    %267 = vmatpush1.msra.mxu0 0.0
    %268 = vmatprep.subr.mxu0 0.0
    %269 = vmatpush1.msra.mxu0 0.0
    %270 = vmatprep.subr.mxu0 0.0
    %271 = vmatpush1.msra.mxu0 0.0
    %272 = vmatprep.subr.mxu0 0.0
    %273 = vmatpush1.msra.mxu0 0.0
    %274 = vmatprep.subr.mxu0 0.0
    %275 = vmatpush1.msra.mxu0 0.0
    %276 = vmatprep.subr.mxu0 0.0
    %277 = vmatpush1.msra.mxu0 0.0
    %278 = vmatprep.subr.mxu0 0.0
    %279 = vmatpush1.msra.mxu0 0.0
    %280 = vmatprep.subr.mxu0 0.0
    %281 = vmatpush1.msra.mxu0 0.0
    %282 = vmatprep.subr.mxu0 0.0
    %283 = vmatpush1.msra.mxu0 0.0
    %284 = vmatprep.subr.mxu0 0.0
    %285 = vmatpush1.msra.mxu0 0.0
    %286 = vmatprep.subr.mxu0 0.0
    %287 = vmatpush1.msra.mxu0 0.0
    %288 = vmatprep.subr.mxu0 0.0
    %289 = vmatpush1.msra.mxu0 0.0
    %290 = vmatprep.subr.mxu0 0.0
    %291 = vmatpush1.msra.mxu0 0.0
    %292 = vmatprep.subr.mxu0 0.0
    %293 = vmatpush1.msra.mxu0 0.0
    %294 = vmatprep.subr.mxu0 0.0
    %295 = vmatpush1.msra.mxu0 0.0
    %296 = vmatprep.subr.mxu0 0.0
    %297 = vmatpush1.msra.mxu0 0.0
    %298 = vmatprep.mubr.f32.mxu0 0.0
    %299 = vmatmul.mubr.f32.gmra.mrb[0].mxu0 %v232
    %v300 = vpop.f32.mrb[0].mxu0
    %v301 = vadd.f32 %v228, %v300
    %v302 = vpop.f32.mrb[0].mxu0
    %303 = vdwg.mxu0
    %vm304 = vcmask 261120
    %v305 = vsel %vm304, %v301, -inf
    %306 = vmax.xlane.f32.xlu0 %v305
    %v307 = vpop.xlane.xlu0 %306
    %v308 = vsub.f32 %v301, %v307
    %v309 = vmul.f32 %v308, 1.442695
    %v310 = vpow.pop %v309
    %v311 = vsel %vm304, %v310, 0.0
    %312 = vadd.xlane.f32.xlu0 %v311
    %v313 = vpop.xlane.xlu0 %312
    %v314 = vrcp.pop %v313
    %v315 = vmul.f32 %v310, %v314
    %v316 = vld [vmem:[%s5] sm:$0xff]
    %v317 = vld [vmem:[%s5 + $0x8] sm:$0xff]
    %v318 = vld [vmem:[%s5 + $0x10] sm:$0xff]
    %v319 = vld [vmem:[%s5 + $0x18] sm:$0xff]
    %v320 = vld [vmem:[%s6] sm:$0x3]
    %v322 = vlaneseq
    %v323 = vshrl.u32 %v322, 7
    %v324 = vsub.s32 0, %v323
    %v325 = vrot.slane %v320, %v324
    %v326 = vlaneseq
    %v327 = vshrl.u32 %v326, 7
    %v328 = vsub.s32 1, %v327
    %v329 = vrot.slane %v320, %v328
    %332 = vmatprep.subr.mxu0 %v317
    %333 = vmatpush1.msra.mxu0 %v316
    %334 = vmatprep.subr.mxu0 %v319
    %335 = vmatpush1.msra.mxu0 %v318
    %336 = vmatprep.subr.mxu0 0.0
    %337 = vmatpush1.msra.mxu0 0.0
    %338 = vmatprep.subr.mxu0 0.0
    %339 = vmatpush1.msra.mxu0 0.0
    %340 = vmatprep.subr.mxu0 0.0
    %341 = vmatpush1.msra.mxu0 0.0
    %342 = vmatprep.subr.mxu0 0.0
    %343 = vmatpush1.msra.mxu0 0.0
    %344 = vmatprep.subr.mxu0 0.0
    %345 = vmatpush1.msra.mxu0 0.0
    %346 = vmatprep.subr.mxu0 0.0
    %347 = vmatpush1.msra.mxu0 0.0
    %348 = vmatprep.subr.mxu0 0.0
    %349 = vmatpush1.msra.mxu0 0.0
    %350 = vmatprep.subr.mxu0 0.0
    %351 = vmatpush1.msra.mxu0 0.0
    %352 = vmatprep.subr.mxu0 0.0
    %353 = vmatpush1.msra.mxu0 0.0
    %354 = vmatprep.subr.mxu0 0.0
    %355 = vmatpush1.msra.mxu0 0.0
    %356 = vmatprep.subr.mxu0 0.0
    %357 = vmatpush1.msra.mxu0 0.0
    %358 = vmatprep.subr.mxu0 0.0
    %359 = vmatpush1.msra.mxu0 0.0
    %360 = vmatprep.subr.mxu0 0.0
    %361 = vmatpush1.msra.mxu0 0.0
    %362 = vmatprep.subr.mxu0 0.0
    %363 = vmatpush1.msra.mxu0 0.0
    %364 = vmatprep.subr.mxu0 0.0
    %365 = vmatpush1.msra.mxu0 0.0
    %366 = vmatprep.subr.mxu0 0.0
    %367 = vmatpush1.msra.mxu0 0.0
    %368 = vmatprep.subr.mxu0 0.0
    %369 = vmatpush1.msra.mxu0 0.0
    %370 = vmatprep.subr.mxu0 0.0
    %371 = vmatpush1.msra.mxu0 0.0
    %372 = vmatprep.subr.mxu0 0.0
    %373 = vmatpush1.msra.mxu0 0.0
    %374 = vmatprep.subr.mxu0 0.0
    %375 = vmatpush1.msra.mxu0 0.0
    %376 = vmatprep.subr.mxu0 0.0
    %377 = vmatpush1.msra.mxu0 0.0
    %378 = vmatprep.subr.mxu0 0.0
    %379 = vmatpush1.msra.mxu0 0.0
    %380 = vmatprep.subr.mxu0 0.0
    %381 = vmatpush1.msra.mxu0 0.0
    %382 = vmatprep.subr.mxu0 0.0
    %383 = vmatpush1.msra.mxu0 0.0
    %384 = vmatprep.subr.mxu0 0.0
    %385 = vmatpush1.msra.mxu0 0.0
    %386 = vmatprep.subr.mxu0 0.0
    %387 = vmatpush1.msra.mxu0 0.0
    %388 = vmatprep.subr.mxu0 0.0
    %389 = vmatpush1.msra.mxu0 0.0
    %390 = vmatprep.subr.mxu0 0.0
    %391 = vmatpush1.msra.mxu0 0.0
    %392 = vmatprep.subr.mxu0 0.0
    %393 = vmatpush1.msra.mxu0 0.0
    %394 = vmatprep.subr.mxu0 0.0
    %395 = vmatpush1.msra.mxu0 0.0
    %396 = vmatprep.mubr.f32.mxu0 0.0
    %397 = vmatmul.mubr.f32.gmra.mrb[0].mxu0 %v232
    %v398 = vpop.f32.mrb[0].mxu0
    %v399 = vadd.f32 %v325, %v398
    %v400 = vpop.f32.mrb[0].mxu0
    %v401 = vadd.f32 %v329, %v400
    %402 = vdwg.mxu0
    %v404 = vsel %vm304, %v315, 0
    %406 = vmatprep.subr.mxu0 %v193
    %407 = vmatpush1.msra.mxu0 %v192
    %408 = vmatprep.subr.mxu0 %v195
    %409 = vmatpush1.msra.mxu0 %v194
    %410 = vmatprep.subr.mxu0 %v197
    %411 = vmatpush1.msra.mxu0 %v196
    %412 = vmatprep.subr.mxu0 %v199
    %413 = vmatpush1.msra.mxu0 %v198
    %414 = vmatprep.subr.mxu0 0.0
    %415 = vmatpush1.msra.mxu0 0.0
    %416 = vmatprep.subr.mxu0 0.0
    %417 = vmatpush1.msra.mxu0 0.0
    %418 = vmatprep.subr.mxu0 0.0
    %419 = vmatpush1.msra.mxu0 0.0
    %420 = vmatprep.subr.mxu0 0.0
    %421 = vmatpush1.msra.mxu0 0.0
    %422 = vmatprep.subr.mxu0 0.0
    %423 = vmatpush1.msra.mxu0 0.0
    %424 = vmatprep.subr.mxu0 0.0
    %425 = vmatpush1.msra.mxu0 0.0
    %426 = vmatprep.subr.mxu0 0.0
    %427 = vmatpush1.msra.mxu0 0.0
    %428 = vmatprep.subr.mxu0 0.0
    %429 = vmatpush1.msra.mxu0 0.0
    %430 = vmatprep.subr.mxu0 0.0
    %431 = vmatpush1.msra.mxu0 0.0
    %432 = vmatprep.subr.mxu0 0.0
    %433 = vmatpush1.msra.mxu0 0.0
    %434 = vmatprep.subr.mxu0 0.0
    %435 = vmatpush1.msra.mxu0 0.0
    %436 = vmatprep.subr.mxu0 0.0
    %437 = vmatpush1.msra.mxu0 0.0
    %438 = vmatprep.subr.mxu0 0.0
    %439 = vmatpush1.msra.mxu0 0.0
    %440 = vmatprep.subr.mxu0 0.0
    %441 = vmatpush1.msra.mxu0 0.0
    %442 = vmatprep.subr.mxu0 0.0
    %443 = vmatpush1.msra.mxu0 0.0
    %444 = vmatprep.subr.mxu0 0.0
    %445 = vmatpush1.msra.mxu0 0.0
    %446 = vmatprep.subr.mxu0 0.0
    %447 = vmatpush1.msra.mxu0 0.0
    %448 = vmatprep.subr.mxu0 0.0
    %449 = vmatpush1.msra.mxu0 0.0
    %450 = vmatprep.subr.mxu0 0.0
    %451 = vmatpush1.msra.mxu0 0.0
    %452 = vmatprep.subr.mxu0 0.0
    %453 = vmatpush1.msra.mxu0 0.0
    %454 = vmatprep.subr.mxu0 0.0
    %455 = vmatpush1.msra.mxu0 0.0
    %456 = vmatprep.subr.mxu0 0.0
    %457 = vmatpush1.msra.mxu0 0.0
    %458 = vmatprep.subr.mxu0 0.0
    %459 = vmatpush1.msra.mxu0 0.0
    %460 = vmatprep.subr.mxu0 0.0
    %461 = vmatpush1.msra.mxu0 0.0
    %462 = vmatprep.subr.mxu0 0.0
    %463 = vmatpush1.msra.mxu0 0.0
    %464 = vmatprep.subr.mxu0 0.0
    %465 = vmatpush1.msra.mxu0 0.0
    %466 = vmatprep.subr.mxu0 0.0
    %467 = vmatpush1.msra.mxu0 0.0
    %468 = vmatprep.subr.mxu0 0.0
    %469 = vmatpush1.msra.mxu0 0.0
    %470 = vmatprep.mubr.f32.mxu0 0.0
    %471 = vmatmul.mubr.f32.gmra.mrb[0].mxu0 %v404
    %v472 = vpop.f32.mrb[0].mxu0
    %v473 = vadd.f32 0.0, %v472
    %v474 = vpop.f32.mrb[0].mxu0
    %v475 = vadd.f32 0.0, %v474
    %476 = vdwg.mxu0
    %v477 = vmul.f32 %v473, %v399
    %v478 = vmul.f32 %v475, %v401
    %vm479 = vcmask 523264
    %v481 = vsel %vm479, %v478, 0
    %483 = vmatprep.subr.mxu0 0.0
    %484 = vmatpush1.msra.mxu0 %v200
    %485 = vmatprep.subr.mxu0 0.0
    %486 = vmatpush1.msra.mxu0 %v201
    %487 = vmatprep.subr.mxu0 0.0
    %488 = vmatpush1.msra.mxu0 %v202
    %489 = vmatprep.subr.mxu0 0.0
    %490 = vmatpush1.msra.mxu0 %v203
    %491 = vmatprep.subr.mxu0 0.0
    %492 = vmatpush1.msra.mxu0 %v204
    %493 = vmatprep.subr.mxu0 0.0
    %494 = vmatpush1.msra.mxu0 %v205
    %495 = vmatprep.subr.mxu0 0.0
    %496 = vmatpush1.msra.mxu0 %v206
    %497 = vmatprep.subr.mxu0 0.0
    %498 = vmatpush1.msra.mxu0 %v207
    %499 = vmatprep.subr.mxu0 0.0
    %500 = vmatpush1.msra.mxu0 %v208
    %501 = vmatprep.subr.mxu0 0.0
    %502 = vmatpush1.msra.mxu0 %v209
    %503 = vmatprep.subr.mxu0 0.0
    %504 = vmatpush1.msra.mxu0 %v210
    %505 = vmatprep.subr.mxu0 0.0
    %506 = vmatpush1.msra.mxu0 %v211
    %507 = vmatprep.subr.mxu0 0.0
    %508 = vmatpush1.msra.mxu0 %v212
    %509 = vmatprep.subr.mxu0 0.0
    %510 = vmatpush1.msra.mxu0 %v213
    %511 = vmatprep.subr.mxu0 0.0
    %512 = vmatpush1.msra.mxu0 %v214
    %513 = vmatprep.subr.mxu0 0.0
    %514 = vmatpush1.msra.mxu0 %v215
    %515 = vmatprep.subr.mxu0 0.0
    %516 = vmatpush1.msra.mxu0 %v216
    %517 = vmatprep.subr.mxu0 0.0
    %518 = vmatpush1.msra.mxu0 %v217
    %519 = vmatprep.subr.mxu0 0.0
    %520 = vmatpush1.msra.mxu0 %v218
    %521 = vmatprep.subr.mxu0 0.0
    %522 = vmatpush1.msra.mxu0 %v219
    %523 = vmatprep.subr.mxu0 0.0
    %524 = vmatpush1.msra.mxu0 %v220
    %525 = vmatprep.subr.mxu0 0.0
    %526 = vmatpush1.msra.mxu0 %v221
    %527 = vmatprep.subr.mxu0 0.0
    %528 = vmatpush1.msra.mxu0 %v222
    %529 = vmatprep.subr.mxu0 0.0
    %530 = vmatpush1.msra.mxu0 %v223
    %531 = vmatprep.subr.mxu0 0.0
    %532 = vmatpush1.msra.mxu0 0.0
    %533 = vmatprep.subr.mxu0 0.0
    %534 = vmatpush1.msra.mxu0 0.0
    %535 = vmatprep.subr.mxu0 0.0
    %536 = vmatpush1.msra.mxu0 0.0
    %537 = vmatprep.subr.mxu0 0.0
    %538 = vmatpush1.msra.mxu0 0.0
    %539 = vmatprep.subr.mxu0 0.0
    %540 = vmatpush1.msra.mxu0 0.0
    %541 = vmatprep.subr.mxu0 0.0
    %542 = vmatpush1.msra.mxu0 0.0
    %543 = vmatprep.subr.mxu0 0.0
    %544 = vmatpush1.msra.mxu0 0.0
    %545 = vmatprep.subr.mxu0 0.0
    %546 = vmatpush1.msra.mxu0 0.0
    %547 = vmatprep.mubr.f32.mxu0 %v481
    %548 = vmatmul.mubr.f32.gmra.mrb[0].mxu0 %v477
    %v549 = vpop.f32.mrb[0].mxu0
    %v550 = vadd.f32 0.0, %v549
    %v551 = vpop.f32.mrb[0].mxu0
    %552 = vdwg.mxu0
    %553 = vst [vmem:[#allocation7] sm:$0xff] %v550
    %v555 = vsel %vm230, %v187, 0
    %557 = vmatprep.subr.mxu0 0.0
    %558 = vmatpush1.msra.mxu0 %v189
    %559 = vmatprep.subr.mxu0 0.0
    %560 = vmatpush1.msra.mxu0 %v190
    %561 = vmatprep.subr.mxu0 0.0
    %562 = vmatpush1.msra.mxu0 0.0
    %563 = vmatprep.subr.mxu0 0.0
    %564 = vmatpush1.msra.mxu0 0.0
    %565 = vmatprep.subr.mxu0 0.0
    %566 = vmatpush1.msra.mxu0 0.0
    %567 = vmatprep.subr.mxu0 0.0
    %568 = vmatpush1.msra.mxu0 0.0
    %569 = vmatprep.subr.mxu0 0.0
    %570 = vmatpush1.msra.mxu0 0.0
    %571 = vmatprep.subr.mxu0 0.0
    %572 = vmatpush1.msra.mxu0 0.0
    %573 = vmatprep.subr.mxu0 0.0
    %574 = vmatpush1.msra.mxu0 0.0
    %575 = vmatprep.subr.mxu0 0.0
    %576 = vmatpush1.msra.mxu0 0.0
    %577 = vmatprep.subr.mxu0 0.0
    %578 = vmatpush1.msra.mxu0 0.0
    %579 = vmatprep.subr.mxu0 0.0
    %580 = vmatpush1.msra.mxu0 0.0
    %581 = vmatprep.subr.mxu0 0.0
    %582 = vmatpush1.msra.mxu0 0.0
    %583 = vmatprep.subr.mxu0 0.0
    %584 = vmatpush1.msra.mxu0 0.0
    %585 = vmatprep.subr.mxu0 0.0
    %586 = vmatpush1.msra.mxu0 0.0
    %587 = vmatprep.subr.mxu0 0.0
    %588 = vmatpush1.msra.mxu0 0.0
    %589 = vmatprep.subr.mxu0 0.0
    %590 = vmatpush1.msra.mxu0 0.0
    %591 = vmatprep.subr.mxu0 0.0
    %592 = vmatpush1.msra.mxu0 0.0
    %593 = vmatprep.subr.mxu0 0.0
    %594 = vmatpush1.msra.mxu0 0.0
    %595 = vmatprep.subr.mxu0 0.0
    %596 = vmatpush1.msra.mxu0 0.0
    %597 = vmatprep.subr.mxu0 0.0
    %598 = vmatpush1.msra.mxu0 0.0
    %599 = vmatprep.subr.mxu0 0.0
    %600 = vmatpush1.msra.mxu0 0.0
    %601 = vmatprep.subr.mxu0 0.0
    %602 = vmatpush1.msra.mxu0 0.0
    %603 = vmatprep.subr.mxu0 0.0
    %604 = vmatpush1.msra.mxu0 0.0
    %605 = vmatprep.subr.mxu0 0.0
    %606 = vmatpush1.msra.mxu0 0.0
    %607 = vmatprep.subr.mxu0 0.0
    %608 = vmatpush1.msra.mxu0 0.0
    %609 = vmatprep.subr.mxu0 0.0
    %610 = vmatpush1.msra.mxu0 0.0
    %611 = vmatprep.subr.mxu0 0.0
    %612 = vmatpush1.msra.mxu0 0.0
    %613 = vmatprep.subr.mxu0 0.0
    %614 = vmatpush1.msra.mxu0 0.0
    %615 = vmatprep.subr.mxu0 0.0
    %616 = vmatpush1.msra.mxu0 0.0
    %617 = vmatprep.subr.mxu0 0.0
    %618 = vmatpush1.msra.mxu0 0.0
    %619 = vmatprep.subr.mxu0 0.0
    %620 = vmatpush1.msra.mxu0 0.0
    %621 = vmatprep.mubr.f32.mxu0 0.0
    %622 = vmatmul.mubr.f32.gmra.mrb[0].mxu0 %v555
    %v623 = vpop.f32.mrb[0].mxu0
    %v624 = vadd.f32 %v228, %v623
    %v625 = vpop.f32.mrb[0].mxu0
    %626 = vdwg.mxu0
    %v627 = vsel %vm304, %v624, -inf
    %628 = vmax.xlane.f32.xlu0 %v627
    %v629 = vpop.xlane.xlu0 %628
    %v630 = vsub.f32 %v624, %v629
    %v631 = vmul.f32 %v630, 1.442695
    %v632 = vpow.pop %v631
    %v633 = vsel %vm304, %v632, 0.0
    %634 = vadd.xlane.f32.xlu0 %v633
    %v635 = vpop.xlane.xlu0 %634
    %v636 = vrcp.pop %v635
    %v637 = vmul.f32 %v632, %v636
    %s638 = scalar_lea.vmem %s5, 32
    %v639 = vld [vmem:[%s638] sm:$0xff]
    %v640 = vld [vmem:[%s638 + $0x8] sm:$0xff]
    %v641 = vld [vmem:[%s638 + $0x10] sm:$0xff]
    %v642 = vld [vmem:[%s638 + $0x18] sm:$0xff]
    %s643 = scalar_lea.vmem %s6, 2
    %v644 = vld [vmem:[%s643] sm:$0x3]
    %v646 = vlaneseq
    %v647 = vshrl.u32 %v646, 7
    %v648 = vsub.s32 0, %v647
    %v649 = vrot.slane %v644, %v648
    %v650 = vlaneseq
    %v651 = vshrl.u32 %v650, 7
    %v652 = vsub.s32 1, %v651
    %v653 = vrot.slane %v644, %v652
    %656 = vmatprep.subr.mxu0 %v640
    %657 = vmatpush1.msra.mxu0 %v639
    %658 = vmatprep.subr.mxu0 %v642
    %659 = vmatpush1.msra.mxu0 %v641
    %660 = vmatprep.subr.mxu0 0.0
    %661 = vmatpush1.msra.mxu0 0.0
    %662 = vmatprep.subr.mxu0 0.0
    %663 = vmatpush1.msra.mxu0 0.0
    %664 = vmatprep.subr.mxu0 0.0
    %665 = vmatpush1.msra.mxu0 0.0
    %666 = vmatprep.subr.mxu0 0.0
    %667 = vmatpush1.msra.mxu0 0.0
    %668 = vmatprep.subr.mxu0 0.0
    %669 = vmatpush1.msra.mxu0 0.0
    %670 = vmatprep.subr.mxu0 0.0
    %671 = vmatpush1.msra.mxu0 0.0
    %672 = vmatprep.subr.mxu0 0.0
    %673 = vmatpush1.msra.mxu0 0.0
    %674 = vmatprep.subr.mxu0 0.0
    %675 = vmatpush1.msra.mxu0 0.0
    %676 = vmatprep.subr.mxu0 0.0
    %677 = vmatpush1.msra.mxu0 0.0
    %678 = vmatprep.subr.mxu0 0.0
    %679 = vmatpush1.msra.mxu0 0.0
    %680 = vmatprep.subr.mxu0 0.0
    %681 = vmatpush1.msra.mxu0 0.0
    %682 = vmatprep.subr.mxu0 0.0
    %683 = vmatpush1.msra.mxu0 0.0
    %684 = vmatprep.subr.mxu0 0.0
    %685 = vmatpush1.msra.mxu0 0.0
    %686 = vmatprep.subr.mxu0 0.0
    %687 = vmatpush1.msra.mxu0 0.0
    %688 = vmatprep.subr.mxu0 0.0
    %689 = vmatpush1.msra.mxu0 0.0
    %690 = vmatprep.subr.mxu0 0.0
    %691 = vmatpush1.msra.mxu0 0.0
    %692 = vmatprep.subr.mxu0 0.0
    %693 = vmatpush1.msra.mxu0 0.0
    %694 = vmatprep.subr.mxu0 0.0
    %695 = vmatpush1.msra.mxu0 0.0
    %696 = vmatprep.subr.mxu0 0.0
    %697 = vmatpush1.msra.mxu0 0.0
    %698 = vmatprep.subr.mxu0 0.0
    %699 = vmatpush1.msra.mxu0 0.0
    %700 = vmatprep.subr.mxu0 0.0
    %701 = vmatpush1.msra.mxu0 0.0
    %702 = vmatprep.subr.mxu0 0.0
    %703 = vmatpush1.msra.mxu0 0.0
    %704 = vmatprep.subr.mxu0 0.0
    %705 = vmatpush1.msra.mxu0 0.0
    %706 = vmatprep.subr.mxu0 0.0
    %707 = vmatpush1.msra.mxu0 0.0
    %708 = vmatprep.subr.mxu0 0.0
    %709 = vmatpush1.msra.mxu0 0.0
    %710 = vmatprep.subr.mxu0 0.0
    %711 = vmatpush1.msra.mxu0 0.0
    %712 = vmatprep.subr.mxu0 0.0
    %713 = vmatpush1.msra.mxu0 0.0
    %714 = vmatprep.subr.mxu0 0.0
    %715 = vmatpush1.msra.mxu0 0.0
    %716 = vmatprep.subr.mxu0 0.0
    %717 = vmatpush1.msra.mxu0 0.0
    %718 = vmatprep.subr.mxu0 0.0
    %719 = vmatpush1.msra.mxu0 0.0
    %720 = vmatprep.mubr.f32.mxu0 0.0
    %721 = vmatmul.mubr.f32.gmra.mrb[0].mxu0 %v555
    %v722 = vpop.f32.mrb[0].mxu0
    %v723 = vadd.f32 %v649, %v722
    %v724 = vpop.f32.mrb[0].mxu0
    %v725 = vadd.f32 %v653, %v724
    %726 = vdwg.mxu0
    %v728 = vsel %vm304, %v637, 0
    %730 = vmatprep.subr.mxu0 %v193
    %731 = vmatpush1.msra.mxu0 %v192
    %732 = vmatprep.subr.mxu0 %v195
    %733 = vmatpush1.msra.mxu0 %v194
    %734 = vmatprep.subr.mxu0 %v197
    %735 = vmatpush1.msra.mxu0 %v196
    %736 = vmatprep.subr.mxu0 %v199
    %737 = vmatpush1.msra.mxu0 %v198
    %738 = vmatprep.subr.mxu0 0.0
    %739 = vmatpush1.msra.mxu0 0.0
    %740 = vmatprep.subr.mxu0 0.0
    %741 = vmatpush1.msra.mxu0 0.0
    %742 = vmatprep.subr.mxu0 0.0
    %743 = vmatpush1.msra.mxu0 0.0
    %744 = vmatprep.subr.mxu0 0.0
    %745 = vmatpush1.msra.mxu0 0.0
    %746 = vmatprep.subr.mxu0 0.0
    %747 = vmatpush1.msra.mxu0 0.0
    %748 = vmatprep.subr.mxu0 0.0
    %749 = vmatpush1.msra.mxu0 0.0
    %750 = vmatprep.subr.mxu0 0.0
    %751 = vmatpush1.msra.mxu0 0.0
    %752 = vmatprep.subr.mxu0 0.0
    %753 = vmatpush1.msra.mxu0 0.0
    %754 = vmatprep.subr.mxu0 0.0
    %755 = vmatpush1.msra.mxu0 0.0
    %756 = vmatprep.subr.mxu0 0.0
    %757 = vmatpush1.msra.mxu0 0.0
    %758 = vmatprep.subr.mxu0 0.0
    %759 = vmatpush1.msra.mxu0 0.0
    %760 = vmatprep.subr.mxu0 0.0
    %761 = vmatpush1.msra.mxu0 0.0
    %762 = vmatprep.subr.mxu0 0.0
    %763 = vmatpush1.msra.mxu0 0.0
    %764 = vmatprep.subr.mxu0 0.0
    %765 = vmatpush1.msra.mxu0 0.0
    %766 = vmatprep.subr.mxu0 0.0
    %767 = vmatpush1.msra.mxu0 0.0
    %768 = vmatprep.subr.mxu0 0.0
    %769 = vmatpush1.msra.mxu0 0.0
    %770 = vmatprep.subr.mxu0 0.0
    %771 = vmatpush1.msra.mxu0 0.0
    %772 = vmatprep.subr.mxu0 0.0
    %773 = vmatpush1.msra.mxu0 0.0
    %774 = vmatprep.subr.mxu0 0.0
    %775 = vmatpush1.msra.mxu0 0.0
    %776 = vmatprep.subr.mxu0 0.0
    %777 = vmatpush1.msra.mxu0 0.0
    %778 = vmatprep.subr.mxu0 0.0
    %779 = vmatpush1.msra.mxu0 0.0
    %780 = vmatprep.subr.mxu0 0.0
    %781 = vmatpush1.msra.mxu0 0.0
    %782 = vmatprep.subr.mxu0 0.0
    %783 = vmatpush1.msra.mxu0 0.0
    %784 = vmatprep.subr.mxu0 0.0
    %785 = vmatpush1.msra.mxu0 0.0
    %786 = vmatprep.subr.mxu0 0.0
    %787 = vmatpush1.msra.mxu0 0.0
    %788 = vmatprep.subr.mxu0 0.0
    %789 = vmatpush1.msra.mxu0 0.0
    %790 = vmatprep.subr.mxu0 0.0
    %791 = vmatpush1.msra.mxu0 0.0
    %792 = vmatprep.subr.mxu0 0.0
    %793 = vmatpush1.msra.mxu0 0.0
    %794 = vmatprep.mubr.f32.mxu0 0.0
    %795 = vmatmul.mubr.f32.gmra.mrb[0].mxu0 %v728
    %v796 = vpop.f32.mrb[0].mxu0
    %v797 = vadd.f32 0.0, %v796
    %v798 = vpop.f32.mrb[0].mxu0
    %v799 = vadd.f32 0.0, %v798
    %800 = vdwg.mxu0
    %v801 = vmul.f32 %v797, %v723
    %v802 = vmul.f32 %v799, %v725
    %v804 = vsel %vm479, %v802, 0
    %806 = vmatprep.subr.mxu0 0.0
    %807 = vmatpush1.msra.mxu0 %v200
    %808 = vmatprep.subr.mxu0 0.0
    %809 = vmatpush1.msra.mxu0 %v201
    %810 = vmatprep.subr.mxu0 0.0
    %811 = vmatpush1.msra.mxu0 %v202
    %812 = vmatprep.subr.mxu0 0.0
    %813 = vmatpush1.msra.mxu0 %v203
    %814 = vmatprep.subr.mxu0 0.0
    %815 = vmatpush1.msra.mxu0 %v204
    %816 = vmatprep.subr.mxu0 0.0
    %817 = vmatpush1.msra.mxu0 %v205
    %818 = vmatprep.subr.mxu0 0.0
    %819 = vmatpush1.msra.mxu0 %v206
    %820 = vmatprep.subr.mxu0 0.0
    %821 = vmatpush1.msra.mxu0 %v207
    %822 = vmatprep.subr.mxu0 0.0
    %823 = vmatpush1.msra.mxu0 %v208
    %824 = vmatprep.subr.mxu0 0.0
    %825 = vmatpush1.msra.mxu0 %v209
    %826 = vmatprep.subr.mxu0 0.0
    %827 = vmatpush1.msra.mxu0 %v210
    %828 = vmatprep.subr.mxu0 0.0
    %829 = vmatpush1.msra.mxu0 %v211
    %830 = vmatprep.subr.mxu0 0.0
    %831 = vmatpush1.msra.mxu0 %v212
    %832 = vmatprep.subr.mxu0 0.0
    %833 = vmatpush1.msra.mxu0 %v213
    %834 = vmatprep.subr.mxu0 0.0
    %835 = vmatpush1.msra.mxu0 %v214
    %836 = vmatprep.subr.mxu0 0.0
    %837 = vmatpush1.msra.mxu0 %v215
    %838 = vmatprep.subr.mxu0 0.0
    %839 = vmatpush1.msra.mxu0 %v216
    %840 = vmatprep.subr.mxu0 0.0
    %841 = vmatpush1.msra.mxu0 %v217
    %842 = vmatprep.subr.mxu0 0.0
    %843 = vmatpush1.msra.mxu0 %v218
    %844 = vmatprep.subr.mxu0 0.0
    %845 = vmatpush1.msra.mxu0 %v219
    %846 = vmatprep.subr.mxu0 0.0
    %847 = vmatpush1.msra.mxu0 %v220
    %848 = vmatprep.subr.mxu0 0.0
    %849 = vmatpush1.msra.mxu0 %v221
    %850 = vmatprep.subr.mxu0 0.0
    %851 = vmatpush1.msra.mxu0 %v222
    %852 = vmatprep.subr.mxu0 0.0
    %853 = vmatpush1.msra.mxu0 %v223
    %854 = vmatprep.subr.mxu0 0.0
    %855 = vmatpush1.msra.mxu0 0.0
    %856 = vmatprep.subr.mxu0 0.0
    %857 = vmatpush1.msra.mxu0 0.0
    %858 = vmatprep.subr.mxu0 0.0
    %859 = vmatpush1.msra.mxu0 0.0
    %860 = vmatprep.subr.mxu0 0.0
    %861 = vmatpush1.msra.mxu0 0.0
    %862 = vmatprep.subr.mxu0 0.0
    %863 = vmatpush1.msra.mxu0 0.0
    %864 = vmatprep.subr.mxu0 0.0
    %865 = vmatpush1.msra.mxu0 0.0
    %866 = vmatprep.subr.mxu0 0.0
    %867 = vmatpush1.msra.mxu0 0.0
    %868 = vmatprep.subr.mxu0 0.0
    %869 = vmatpush1.msra.mxu0 0.0
    %870 = vmatprep.mubr.f32.mxu0 %v804
    %871 = vmatmul.mubr.f32.gmra.mrb[0].mxu0 %v801
    %v872 = vpop.f32.mrb[0].mxu0
    %v873 = vadd.f32 0.0, %v872
    %v874 = vpop.f32.mrb[0].mxu0
    %875 = vdwg.mxu0
    %876 = vst [vmem:[#allocation7 + $0x8] sm:$0xff] %v873
    %v878 = vsel %vm230, %v188, 0
    %880 = vmatprep.subr.mxu0 0.0
    %881 = vmatpush1.msra.mxu0 %v189
    %882 = vmatprep.subr.mxu0 0.0
    %883 = vmatpush1.msra.mxu0 %v190
    %884 = vmatprep.subr.mxu0 0.0
    %885 = vmatpush1.msra.mxu0 0.0
    %886 = vmatprep.subr.mxu0 0.0
    %887 = vmatpush1.msra.mxu0 0.0
    %888 = vmatprep.subr.mxu0 0.0
    %889 = vmatpush1.msra.mxu0 0.0
    %890 = vmatprep.subr.mxu0 0.0
    %891 = vmatpush1.msra.mxu0 0.0
    %892 = vmatprep.subr.mxu0 0.0
    %893 = vmatpush1.msra.mxu0 0.0
    %894 = vmatprep.subr.mxu0 0.0
    %895 = vmatpush1.msra.mxu0 0.0
    %896 = vmatprep.subr.mxu0 0.0
    %897 = vmatpush1.msra.mxu0 0.0
    %898 = vmatprep.subr.mxu0 0.0
    %899 = vmatpush1.msra.mxu0 0.0
    %900 = vmatprep.subr.mxu0 0.0
    %901 = vmatpush1.msra.mxu0 0.0
    %902 = vmatprep.subr.mxu0 0.0
    %903 = vmatpush1.msra.mxu0 0.0
    %904 = vmatprep.subr.mxu0 0.0
    %905 = vmatpush1.msra.mxu0 0.0
    %906 = vmatprep.subr.mxu0 0.0
    %907 = vmatpush1.msra.mxu0 0.0
    %908 = vmatprep.subr.mxu0 0.0
    %909 = vmatpush1.msra.mxu0 0.0
    %910 = vmatprep.subr.mxu0 0.0
    %911 = vmatpush1.msra.mxu0 0.0
    %912 = vmatprep.subr.mxu0 0.0
    %913 = vmatpush1.msra.mxu0 0.0
    %914 = vmatprep.subr.mxu0 0.0
    %915 = vmatpush1.msra.mxu0 0.0
    %916 = vmatprep.subr.mxu0 0.0
    %917 = vmatpush1.msra.mxu0 0.0
    %918 = vmatprep.subr.mxu0 0.0
    %919 = vmatpush1.msra.mxu0 0.0
    %920 = vmatprep.subr.mxu0 0.0
    %921 = vmatpush1.msra.mxu0 0.0
    %922 = vmatprep.subr.mxu0 0.0
    %923 = vmatpush1.msra.mxu0 0.0
    %924 = vmatprep.subr.mxu0 0.0
    %925 = vmatpush1.msra.mxu0 0.0
    %926 = vmatprep.subr.mxu0 0.0
    %927 = vmatpush1.msra.mxu0 0.0
    %928 = vmatprep.subr.mxu0 0.0
    %929 = vmatpush1.msra.mxu0 0.0
    %930 = vmatprep.subr.mxu0 0.0
    %931 = vmatpush1.msra.mxu0 0.0
    %932 = vmatprep.subr.mxu0 0.0
    %933 = vmatpush1.msra.mxu0 0.0
    %934 = vmatprep.subr.mxu0 0.0
    %935 = vmatpush1.msra.mxu0 0.0
    %936 = vmatprep.subr.mxu0 0.0
    %937 = vmatpush1.msra.mxu0 0.0
    %938 = vmatprep.subr.mxu0 0.0
    %939 = vmatpush1.msra.mxu0 0.0
    %940 = vmatprep.subr.mxu0 0.0
    %941 = vmatpush1.msra.mxu0 0.0
    %942 = vmatprep.subr.mxu0 0.0
    %943 = vmatpush1.msra.mxu0 0.0
    %944 = vmatprep.mubr.f32.mxu0 0.0
    %945 = vmatmul.mubr.f32.gmra.mrb[0].mxu0 %v878
    %v946 = vpop.f32.mrb[0].mxu0
    %v947 = vadd.f32 %v228, %v946
    %v948 = vpop.f32.mrb[0].mxu0
    %949 = vdwg.mxu0
    %v950 = vsel %vm304, %v947, -inf
    %951 = vmax.xlane.f32.xlu0 %v950
    %v952 = vpop.xlane.xlu0 %951
    %v953 = vsub.f32 %v947, %v952
    %v954 = vmul.f32 %v953, 1.442695
    %v955 = vpow.pop %v954
    %v956 = vsel %vm304, %v955, 0.0
    %957 = vadd.xlane.f32.xlu0 %v956
    %v958 = vpop.xlane.xlu0 %957
    %v959 = vrcp.pop %v958
    %v960 = vmul.f32 %v955, %v959
    %s961 = scalar_lea.vmem %s5, 64
    %v962 = vld [vmem:[%s961] sm:$0xff]
    %v963 = vld [vmem:[%s961 + $0x8] sm:$0xff]
    %v964 = vld [vmem:[%s961 + $0x10] sm:$0xff]
    %v965 = vld [vmem:[%s961 + $0x18] sm:$0xff]
    %s966 = scalar_lea.vmem %s6, 4
    %v967 = vld [vmem:[%s966] sm:$0x3]
    %v969 = vlaneseq
    %v970 = vshrl.u32 %v969, 7
    %v971 = vsub.s32 0, %v970
    %v972 = vrot.slane %v967, %v971
    %v973 = vlaneseq
    %v974 = vshrl.u32 %v973, 7
    %v975 = vsub.s32 1, %v974
    %v976 = vrot.slane %v967, %v975
    %979 = vmatprep.subr.mxu0 %v963
    %980 = vmatpush1.msra.mxu0 %v962
    %981 = vmatprep.subr.mxu0 %v965
    %982 = vmatpush1.msra.mxu0 %v964
    %983 = vmatprep.subr.mxu0 0.0
    %984 = vmatpush1.msra.mxu0 0.0
    %985 = vmatprep.subr.mxu0 0.0
    %986 = vmatpush1.msra.mxu0 0.0
    %987 = vmatprep.subr.mxu0 0.0
    %988 = vmatpush1.msra.mxu0 0.0
    %989 = vmatprep.subr.mxu0 0.0
    %990 = vmatpush1.msra.mxu0 0.0
    %991 = vmatprep.subr.mxu0 0.0
    %992 = vmatpush1.msra.mxu0 0.0
    %993 = vmatprep.subr.mxu0 0.0
    %994 = vmatpush1.msra.mxu0 0.0
    %995 = vmatprep.subr.mxu0 0.0
    %996 = vmatpush1.msra.mxu0 0.0
    %997 = vmatprep.subr.mxu0 0.0
    %998 = vmatpush1.msra.mxu0 0.0
    %999 = vmatprep.subr.mxu0 0.0
    %1000 = vmatpush1.msra.mxu0 0.0
    %1001 = vmatprep.subr.mxu0 0.0
    %1002 = vmatpush1.msra.mxu0 0.0
    %1003 = vmatprep.subr.mxu0 0.0
    %1004 = vmatpush1.msra.mxu0 0.0
    %1005 = vmatprep.subr.mxu0 0.0
    %1006 = vmatpush1.msra.mxu0 0.0
    %1007 = vmatprep.subr.mxu0 0.0
    %1008 = vmatpush1.msra.mxu0 0.0
    %1009 = vmatprep.subr.mxu0 0.0
    %1010 = vmatpush1.msra.mxu0 0.0
    %1011 = vmatprep.subr.mxu0 0.0
    %1012 = vmatpush1.msra.mxu0 0.0
    %1013 = vmatprep.subr.mxu0 0.0
    %1014 = vmatpush1.msra.mxu0 0.0
    %1015 = vmatprep.subr.mxu0 0.0
    %1016 = vmatpush1.msra.mxu0 0.0
    %1017 = vmatprep.subr.mxu0 0.0
    %1018 = vmatpush1.msra.mxu0 0.0
    %1019 = vmatprep.subr.mxu0 0.0
    %1020 = vmatpush1.msra.mxu0 0.0
    %1021 = vmatprep.subr.mxu0 0.0
    %1022 = vmatpush1.msra.mxu0 0.0
    %1023 = vmatprep.subr.mxu0 0.0
    %1024 = vmatpush1.msra.mxu0 0.0
    %1025 = vmatprep.subr.mxu0 0.0
    %1026 = vmatpush1.msra.mxu0 0.0
    %1027 = vmatprep.subr.mxu0 0.0
    %1028 = vmatpush1.msra.mxu0 0.0
    %1029 = vmatprep.subr.mxu0 0.0
    %1030 = vmatpush1.msra.mxu0 0.0
    %1031 = vmatprep.subr.mxu0 0.0
    %1032 = vmatpush1.msra.mxu0 0.0
    %1033 = vmatprep.subr.mxu0 0.0
    %1034 = vmatpush1.msra.mxu0 0.0
    %1035 = vmatprep.subr.mxu0 0.0
    %1036 = vmatpush1.msra.mxu0 0.0
    %1037 = vmatprep.subr.mxu0 0.0
    %1038 = vmatpush1.msra.mxu0 0.0
    %1039 = vmatprep.subr.mxu0 0.0
    %1040 = vmatpush1.msra.mxu0 0.0
    %1041 = vmatprep.subr.mxu0 0.0
    %1042 = vmatpush1.msra.mxu0 0.0
    %1043 = vmatprep.mubr.f32.mxu0 0.0
    %1044 = vmatmul.mubr.f32.gmra.mrb[0].mxu0 %v878
    %v1045 = vpop.f32.mrb[0].mxu0
    %v1046 = vadd.f32 %v972, %v1045
    %v1047 = vpop.f32.mrb[0].mxu0
    %v1048 = vadd.f32 %v976, %v1047
    %1049 = vdwg.mxu0
    %v1051 = vsel %vm304, %v960, 0
    %1053 = vmatprep.subr.mxu0 %v193
    %1054 = vmatpush1.msra.mxu0 %v192
    %1055 = vmatprep.subr.mxu0 %v195
    %1056 = vmatpush1.msra.mxu0 %v194
    %1057 = vmatprep.subr.mxu0 %v197
    %1058 = vmatpush1.msra.mxu0 %v196
    %1059 = vmatprep.subr.mxu0 %v199
    %1060 = vmatpush1.msra.mxu0 %v198
    %1061 = vmatprep.subr.mxu0 0.0
    %1062 = vmatpush1.msra.mxu0 0.0
    %1063 = vmatprep.subr.mxu0 0.0
    %1064 = vmatpush1.msra.mxu0 0.0
    %1065 = vmatprep.subr.mxu0 0.0
    %1066 = vmatpush1.msra.mxu0 0.0
    %1067 = vmatprep.subr.mxu0 0.0
    %1068 = vmatpush1.msra.mxu0 0.0
    %1069 = vmatprep.subr.mxu0 0.0
    %1070 = vmatpush1.msra.mxu0 0.0
    %1071 = vmatprep.subr.mxu0 0.0
    %1072 = vmatpush1.msra.mxu0 0.0
    %1073 = vmatprep.subr.mxu0 0.0
    %1074 = vmatpush1.msra.mxu0 0.0
    %1075 = vmatprep.subr.mxu0 0.0
    %1076 = vmatpush1.msra.mxu0 0.0
    %1077 = vmatprep.subr.mxu0 0.0
    %1078 = vmatpush1.msra.mxu0 0.0
    %1079 = vmatprep.subr.mxu0 0.0
    %1080 = vmatpush1.msra.mxu0 0.0
    %1081 = vmatprep.subr.mxu0 0.0
    %1082 = vmatpush1.msra.mxu0 0.0
    %1083 = vmatprep.subr.mxu0 0.0
    %1084 = vmatpush1.msra.mxu0 0.0
    %1085 = vmatprep.subr.mxu0 0.0
    %1086 = vmatpush1.msra.mxu0 0.0
    %1087 = vmatprep.subr.mxu0 0.0
    %1088 = vmatpush1.msra.mxu0 0.0
    %1089 = vmatprep.subr.mxu0 0.0
    %1090 = vmatpush1.msra.mxu0 0.0
    %1091 = vmatprep.subr.mxu0 0.0
    %1092 = vmatpush1.msra.mxu0 0.0
    %1093 = vmatprep.subr.mxu0 0.0
    %1094 = vmatpush1.msra.mxu0 0.0
    %1095 = vmatprep.subr.mxu0 0.0
    %1096 = vmatpush1.msra.mxu0 0.0
    %1097 = vmatprep.subr.mxu0 0.0
    %1098 = vmatpush1.msra.mxu0 0.0
    %1099 = vmatprep.subr.mxu0 0.0
    %1100 = vmatpush1.msra.mxu0 0.0
    %1101 = vmatprep.subr.mxu0 0.0
    %1102 = vmatpush1.msra.mxu0 0.0
    %1103 = vmatprep.subr.mxu0 0.0
    %1104 = vmatpush1.msra.mxu0 0.0
    %1105 = vmatprep.subr.mxu0 0.0
    %1106 = vmatpush1.msra.mxu0 0.0
    %1107 = vmatprep.subr.mxu0 0.0
    %1108 = vmatpush1.msra.mxu0 0.0
    %1109 = vmatprep.subr.mxu0 0.0
    %1110 = vmatpush1.msra.mxu0 0.0
    %1111 = vmatprep.subr.mxu0 0.0
    %1112 = vmatpush1.msra.mxu0 0.0
    %1113 = vmatprep.subr.mxu0 0.0
    %1114 = vmatpush1.msra.mxu0 0.0
    %1115 = vmatprep.subr.mxu0 0.0
    %1116 = vmatpush1.msra.mxu0 0.0
    %1117 = vmatprep.mubr.f32.mxu0 0.0
    %1118 = vmatmul.mubr.f32.gmra.mrb[0].mxu0 %v1051
    %v1119 = vpop.f32.mrb[0].mxu0
    %v1120 = vadd.f32 0.0, %v1119
    %v1121 = vpop.f32.mrb[0].mxu0
    %v1122 = vadd.f32 0.0, %v1121
    %1123 = vdwg.mxu0
    %v1124 = vmul.f32 %v1120, %v1046
    %v1125 = vmul.f32 %v1122, %v1048
    %v1127 = vsel %vm479, %v1125, 0
    %1129 = vmatprep.subr.mxu0 0.0
    %1130 = vmatpush1.msra.mxu0 %v200
    %1131 = vmatprep.subr.mxu0 0.0
    %1132 = vmatpush1.msra.mxu0 %v201
    %1133 = vmatprep.subr.mxu0 0.0
    %1134 = vmatpush1.msra.mxu0 %v202
    %1135 = vmatprep.subr.mxu0 0.0
    %1136 = vmatpush1.msra.mxu0 %v203
    %1137 = vmatprep.subr.mxu0 0.0
    %1138 = vmatpush1.msra.mxu0 %v204
    %1139 = vmatprep.subr.mxu0 0.0
    %1140 = vmatpush1.msra.mxu0 %v205
    %1141 = vmatprep.subr.mxu0 0.0
    %1142 = vmatpush1.msra.mxu0 %v206
    %1143 = vmatprep.subr.mxu0 0.0
    %1144 = vmatpush1.msra.mxu0 %v207
    %1145 = vmatprep.subr.mxu0 0.0
    %1146 = vmatpush1.msra.mxu0 %v208
    %1147 = vmatprep.subr.mxu0 0.0
    %1148 = vmatpush1.msra.mxu0 %v209
    %1149 = vmatprep.subr.mxu0 0.0
    %1150 = vmatpush1.msra.mxu0 %v210
    %1151 = vmatprep.subr.mxu0 0.0
    %1152 = vmatpush1.msra.mxu0 %v211
    %1153 = vmatprep.subr.mxu0 0.0
    %1154 = vmatpush1.msra.mxu0 %v212
    %1155 = vmatprep.subr.mxu0 0.0
    %1156 = vmatpush1.msra.mxu0 %v213
    %1157 = vmatprep.subr.mxu0 0.0
    %1158 = vmatpush1.msra.mxu0 %v214
    %1159 = vmatprep.subr.mxu0 0.0
    %1160 = vmatpush1.msra.mxu0 %v215
    %1161 = vmatprep.subr.mxu0 0.0
    %1162 = vmatpush1.msra.mxu0 %v216
    %1163 = vmatprep.subr.mxu0 0.0
    %1164 = vmatpush1.msra.mxu0 %v217
    %1165 = vmatprep.subr.mxu0 0.0
    %1166 = vmatpush1.msra.mxu0 %v218
    %1167 = vmatprep.subr.mxu0 0.0
    %1168 = vmatpush1.msra.mxu0 %v219
    %1169 = vmatprep.subr.mxu0 0.0
    %1170 = vmatpush1.msra.mxu0 %v220
    %1171 = vmatprep.subr.mxu0 0.0
    %1172 = vmatpush1.msra.mxu0 %v221
    %1173 = vmatprep.subr.mxu0 0.0
    %1174 = vmatpush1.msra.mxu0 %v222
    %1175 = vmatprep.subr.mxu0 0.0
    %1176 = vmatpush1.msra.mxu0 %v223
    %1177 = vmatprep.subr.mxu0 0.0
    %1178 = vmatpush1.msra.mxu0 0.0
    %1179 = vmatprep.subr.mxu0 0.0
    %1180 = vmatpush1.msra.mxu0 0.0
    %1181 = vmatprep.subr.mxu0 0.0
    %1182 = vmatpush1.msra.mxu0 0.0
    %1183 = vmatprep.subr.mxu0 0.0
    %1184 = vmatpush1.msra.mxu0 0.0
    %1185 = vmatprep.subr.mxu0 0.0
    %1186 = vmatpush1.msra.mxu0 0.0
    %1187 = vmatprep.subr.mxu0 0.0
    %1188 = vmatpush1.msra.mxu0 0.0
    %1189 = vmatprep.subr.mxu0 0.0
    %1190 = vmatpush1.msra.mxu0 0.0
    %1191 = vmatprep.subr.mxu0 0.0
    %1192 = vmatpush1.msra.mxu0 0.0
    %1193 = vmatprep.mubr.f32.mxu0 %v1127
    %1194 = vmatmul.mubr.f32.gmra.mrb[0].mxu0 %v1124
    %v1195 = vpop.f32.mrb[0].mxu0
    %v1196 = vadd.f32 0.0, %v1195
    %v1197 = vpop.f32.mrb[0].mxu0
    %1198 = vdwg.mxu0
    %1199 = vst [vmem:[#allocation7 + $0x10] sm:$0xff] %v1196
    // Predicated region
    $region46: #{tpu_custom_call.1} parent=1 // pred_check
      _
    $region47: #{tpu_custom_call.1} parent=1 // pred_check_branch
      %1201 = sbr.rel (0) target = $region49
    $region48: #{tpu_custom_call.1} parent=1 // pred_region
      %s1203 = ssub.s32 384, 384
      %1204 = vsyncadd [#allocation4], %s1203
      %s1205 = sshll.u32 [#allocation7], 4
      %s1206 = int_to_ptr.vmem [resolvable:$true] %s1205
      %1211 = dma.vmem_to_hbm [thread:$0]  %s1206, 384, %s9, [#allocation4], 128, 128, 8
    $region49: #{tpu_custom_call.1} parent=1 // pred_fallthru
      _
    // Predicated region
    $region50: #{tpu_custom_call.1} parent=1 // pred_check
      _
    $region51: #{tpu_custom_call.1} parent=1 // pred_check_branch
      %1213 = sbr.rel (0) target = $region53
    $region52: #{tpu_custom_call.1} parent=1 // pred_region
      %1214 = dma.done [#allocation4], 384
    $region53: #{tpu_custom_call.1} parent=1 // pred_fallthru
      _
    %1215 = vsyncpa [#allocation3], 1
    %1216 = vsyncpa [#allocation6], 1
    %1217 = vsyncpa [#allocation4], 1

</llo_original>
